<compile_context>
chip_gen: v5e
topology: v5e:2x2
jax: 0.10.0
libtpu: 0.0.40
codegen_flags: <defaults>
</compile_context>

<pallas_src>
import math
import functools

import jax
import jax.numpy as jnp
from jax.experimental import pallas as pl
from jax.experimental.pallas import tpu as pltpu


# Abramowitz & Stegun 7.1.26 erf coefficients (~1.5e-7 abs err) with the GELU 0.5
# pre-folded into the polynomial so the CDF needs no extra scale.
_A1, _A2, _A3, _A4, _A5 = (0.5 * 0.254829592, 0.5 * -0.284496736, 0.5 * 1.421413741,
                           0.5 * -1.453152027, 0.5 * 1.061405429)
_P = 0.3275911
_INV_SQRT2 = 1.0 / math.sqrt(2.0)


def _gelu_erf(z):
    """z * 0.5 * (1 + erf(z / sqrt(2))), matching the PyTorch erf-GELU."""
    # x = |z| / sqrt(2);  t = 1 / (1 + p*x) moved to the EUP (approx recip, ~2^-12).
    x = jnp.abs(z) * _INV_SQRT2
    t = pl.reciprocal(1.0 + _P * x, approx=True)
    half_poly = ((((_A5 * t + _A4) * t + _A3) * t + _A2) * t + _A1) * t   # 0.5 * poly(t)
    h = half_poly * jnp.exp(-0.5 * (z * z))            # 0.5*poly*exp(-x^2)  (EUP exp)
    cdf = jnp.where(z >= 0.0, 1.0 - h, h)              # Phi(z) = 0.5*(1 + erf(z/sqrt 2))
    return z * cdf


def _head_transform_kernel(x_ref, wT_ref, b_ref, gamma_ref, beta_ref, out_ref, *, eps):
    # Dense: z = x @ W^T + b.  bf16 operands on the MXU, f32 accumulation.
    z = jnp.dot(x_ref[...].astype(jnp.bfloat16), wT_ref[...],
                preferred_element_type=jnp.float32)
    z = z + b_ref[...]                                  # bias pre-cast to f32

    # erf-GELU (exact-style, as in the PyTorch module).
    g = _gelu_erf(z)

    # LayerNorm over the hidden dim (biased variance like torch), f32 math.
    mean = jnp.mean(g, axis=-1, keepdims=True)
    var = jnp.maximum(jnp.mean(g * g, axis=-1, keepdims=True) - mean * mean, 0.0)
    inv = jax.lax.rsqrt(var + eps)                      # EUP rsqrt (free slot)
    out = (g - mean) * inv * gamma_ref[...] + beta_ref[...]

    # One lane-dense [tm, H] store (no masked sub-128-lane partial stores).
    out_ref[...] = out.astype(out_ref.dtype)


def bert_prediction_head_transform(hidden_states, params, *, eps=1e-12, block_rows=512):
    """hidden_states: [..., H]; params: {'dense': (W[H,H], b[H]), 'layernorm': (gamma[H], beta[H])}.

    block_rows: 512 is safe on v7x (64 MiB VMEM); sweep up to 1024 on v5e/v6e (128 MiB).
    """
    orig_shape = hidden_states.shape
    H = orig_shape[-1]
    x2d = hidden_states.reshape(-1, H)
    N = x2d.shape[0]

    w, b = params["dense"]
    gamma, beta = params["layernorm"]
    # Pre-transpose once and keep the MXU operand in bf16; pre-cast the small vectors
    # to f32 so the kernel does no per-tile casts.
    # TODO(synk): accept an already-transposed / bf16 weight to drop this per-call prep.
    w_t = jnp.asarray(w).T.astype(jnp.bfloat16)
    b2 = jnp.asarray(b).reshape(1, H).astype(jnp.float32)
    g2 = jnp.asarray(gamma).reshape(1, H).astype(jnp.float32)
    be2 = jnp.asarray(beta).reshape(1, H).astype(jnp.float32)

    # Row tile: as big as block_rows allows, but keep >= 2 grid steps when N allows so
    # the "parallel" axis can shard across v7x's two TensorCores (tm kept 8-aligned).
    tm = min(block_rows, N)
    if N > 8 and pl.cdiv(N, tm) < 2:
        tm = max(8, (((N + 1) // 2) + 7) // 8 * 8)
    grid = (pl.cdiv(N, tm),)

    # Grid-invariant operands live whole in VMEM: single resident copy, no per-step
    # double buffering (saves a full [H, H] weight copy of VMEM headroom).
    resident = pl.BlockSpec(memory_space=pltpu.MemorySpace.VMEM)

    kernel = functools.partial(_head_transform_kernel, eps=eps)
    out2d = pl.pallas_call(
        kernel,
        out_shape=jax.ShapeDtypeStruct((N, H), hidden_states.dtype),
        grid_spec=pltpu.PrefetchScalarGridSpec(
            num_scalar_prefetch=0,
            grid=grid,
            in_specs=[
                pl.BlockSpec((tm, H), lambda i: (i, 0)),   # activation row tile
                resident,                                  # dense W^T (bf16, resident)
                resident,                                  # dense bias (f32)
                resident,                                  # LayerNorm gamma (f32)
                resident,                                  # LayerNorm beta (f32)
            ],
            out_specs=pl.BlockSpec((tm, H), lambda i: (i, 0)),
        ),
        compiler_params=pltpu.CompilerParams(
            dimension_semantics=("parallel",),
            vmem_limit_bytes=48 << 20,   # above every chip's scoped default, safe on v7x
        ),
    )(x2d, w_t, b2, g2, be2)
    return out2d.reshape(orig_shape)


def _reference(hidden_states, params, *, eps):
    w, b = params["dense"]
    gamma, beta = params["layernorm"]
    y = jnp.einsum("...h,oh->...o", hidden_states, w) + b
    y = y * 0.5 * (1.0 + jax.scipy.special.erf(y / math.sqrt(2.0)))
    mean = y.mean(-1, keepdims=True)
    var = ((y - mean) ** 2).mean(-1, keepdims=True)
    return (y - mean) / jnp.sqrt(var + eps) * gamma + beta


if __name__ == "__main__":
    B, S, H = 2, 8, 128
    EPS = 1e-12

    key = jax.random.PRNGKey(0)
    k_x, k_w, k_b, k_g, k_beta = jax.random.split(key, 5)

    hidden = jax.random.normal(k_x, (B, S, H), dtype=jnp.float32)
    w = jax.random.normal(k_w, (H, H), dtype=jnp.float32) * 0.1
    b = jax.random.normal(k_b, (H,), dtype=jnp.float32) * 0.1
    gamma = 1.0 + jax.random.normal(k_g, (H,), dtype=jnp.float32) * 0.1
    beta = jax.random.normal(k_beta, (H,), dtype=jnp.float32) * 0.1

    params = {"dense": (w, b), "layernorm": (gamma, beta)}

    out = bert_prediction_head_transform(hidden, params, eps=EPS)
    out = jax.block_until_ready(out)

    ref = _reference(hidden, params, eps=EPS)
    assert out.shape == (B, S, H)
    # Kernel uses a bf16 MXU matmul + EUP approx reciprocal; compare against the pure
    # f32 reference with a bf16-scale tolerance (LayerNorm absorbs most of the shift).
    assert jnp.allclose(out, ref, atol=2e-2, rtol=2e-2), "mismatch vs reference"

    print("KERNEL_OK")
</pallas_src>

<mosaic_0001>
module attributes {stable_mosaic.version = 11 : i64} {
  func.func @_head_transform_kernel(%arg0: i32, %arg1: memref<8x128xf32, #tpu.memory_space<vmem>>, %arg2: memref<128x128xbf16, #tpu.memory_space<vmem>>, %arg3: memref<1x128xf32, #tpu.memory_space<vmem>>, %arg4: memref<1x128xf32, #tpu.memory_space<vmem>>, %arg5: memref<1x128xf32, #tpu.memory_space<vmem>>, %arg6: memref<8x128xf32, #tpu.memory_space<vmem>>) attributes {dimension_semantics = [#tpu.dimension_semantics<parallel>], iteration_bounds = array<i64: 2>, scalar_prefetch = 0 : i64, scratch_operands = 0 : i64, tpu.core_type = #tpu.core_type<tc>, window_params = [{transform_indices = @transform_0, window_bounds = array<i64: 8, 128>}, {pipeline_mode = #tpu.pipeline_mode<synchronous>, transform_indices = @transform_1, window_bounds = array<i64: 128, 128>}, {pipeline_mode = #tpu.pipeline_mode<synchronous>, transform_indices = @transform_2, window_bounds = array<i64: 1, 128>}, {pipeline_mode = #tpu.pipeline_mode<synchronous>, transform_indices = @transform_3, window_bounds = array<i64: 1, 128>}, {pipeline_mode = #tpu.pipeline_mode<synchronous>, transform_indices = @transform_4, window_bounds = array<i64: 1, 128>}, {transform_indices = @transform_5, window_bounds = array<i64: 8, 128>}]} {
    %c0 = arith.constant 0 : index
    %c0_0 = arith.constant 0 : index
    %0 = vector.load %arg1[%c0, %c0_0] : memref<8x128xf32, #tpu.memory_space<vmem>>, vector<8x128xf32>
    %1 = arith.truncf %0 : vector<8x128xf32> to vector<8x128xbf16>
    %c0_1 = arith.constant 0 : index
    %c0_2 = arith.constant 0 : index
    %2 = vector.load %arg2[%c0_1, %c0_2] : memref<128x128xbf16, #tpu.memory_space<vmem>>, vector<128x128xbf16>
    %cst = arith.constant dense<0.000000e+00> : vector<8x128xf32>
    %3 = tpu.matmul %1, %2, %cst {dimension_numbers = #tpu.dot_dimension_numbers<[1], [0], [0], [1], [0, 0, 1, 1], [], []>} : vector<8x128xbf16>, vector<128x128xbf16>, vector<8x128xf32> -> vector<8x128xf32>
    %c0_3 = arith.constant 0 : index
    %c0_4 = arith.constant 0 : index
    %4 = vector.load %arg3[%c0_3, %c0_4] : memref<1x128xf32, #tpu.memory_space<vmem>>, vector<1x128xf32>
    %5 = vector.broadcast %4 : vector<1x128xf32> to vector<8x128xf32>
    %6 = arith.addf %3, %5 : vector<8x128xf32>
    %7 = math.absf %6 : vector<8x128xf32>
    %cst_5 = arith.constant 0.707106769 : f32
    %8 = vector.broadcast %cst_5 : f32 to vector<8x128xf32>
    %9 = arith.mulf %7, %8 : vector<8x128xf32>
    %cst_6 = arith.constant 0.327591091 : f32
    %10 = vector.broadcast %cst_6 : f32 to vector<8x128xf32>
    %11 = arith.mulf %10, %9 : vector<8x128xf32>
    %cst_7 = arith.constant 1.000000e+00 : f32
    %12 = vector.broadcast %cst_7 : f32 to vector<8x128xf32>
    %13 = arith.addf %12, %11 : vector<8x128xf32>
    %14 = tpu.reciprocal %13 {approx = true} : vector<8x128xf32> -> vector<8x128xf32>
    %cst_8 = arith.constant 0.53070271 : f32
    %15 = vector.broadcast %cst_8 : f32 to vector<8x128xf32>
    %16 = arith.mulf %15, %14 : vector<8x128xf32>
    %cst_9 = arith.constant -0.72657603 : f32
    %17 = vector.broadcast %cst_9 : f32 to vector<8x128xf32>
    %18 = arith.addf %16, %17 : vector<8x128xf32>
    %19 = arith.mulf %18, %14 : vector<8x128xf32>
    %cst_10 = arith.constant 0.710706889 : f32
    %20 = vector.broadcast %cst_10 : f32 to vector<8x128xf32>
    %21 = arith.addf %19, %20 : vector<8x128xf32>
    %22 = arith.mulf %21, %14 : vector<8x128xf32>
    %cst_11 = arith.constant -0.142248362 : f32
    %23 = vector.broadcast %cst_11 : f32 to vector<8x128xf32>
    %24 = arith.addf %22, %23 : vector<8x128xf32>
    %25 = arith.mulf %24, %14 : vector<8x128xf32>
    %cst_12 = arith.constant 0.127414793 : f32
    %26 = vector.broadcast %cst_12 : f32 to vector<8x128xf32>
    %27 = arith.addf %25, %26 : vector<8x128xf32>
    %28 = arith.mulf %27, %14 : vector<8x128xf32>
    %29 = arith.mulf %6, %6 : vector<8x128xf32>
    %cst_13 = arith.constant -5.000000e-01 : f32
    %30 = vector.broadcast %cst_13 : f32 to vector<8x128xf32>
    %31 = arith.mulf %30, %29 : vector<8x128xf32>
    %32 = math.exp %31 : vector<8x128xf32>
    %33 = arith.mulf %28, %32 : vector<8x128xf32>
    %cst_14 = arith.constant 0.000000e+00 : f32
    %34 = vector.broadcast %cst_14 : f32 to vector<8x128xf32>
    %35 = arith.cmpf oge, %6, %34 : vector<8x128xf32>
    %cst_15 = arith.constant 1.000000e+00 : f32
    %36 = vector.broadcast %cst_15 : f32 to vector<8x128xf32>
    %37 = arith.subf %36, %33 : vector<8x128xf32>
    %38 = arith.select %35, %37, %33 : vector<8x128xi1>, vector<8x128xf32>
    %39 = arith.mulf %6, %38 : vector<8x128xf32>
    %cst_16 = arith.constant dense<0.000000e+00> : vector<8xf32>
    %40 = vector.multi_reduction <add>, %39, %cst_16 [1] : vector<8x128xf32> to vector<8xf32>
    %41 = vector.shape_cast %40 : vector<8xf32> to vector<8x1xf32>
    %cst_17 = arith.constant 1.280000e+02 : f32
    %42 = vector.broadcast %cst_17 : f32 to vector<8x1xf32>
    %43 = arith.divf %41, %42 : vector<8x1xf32>
    %44 = arith.mulf %39, %39 : vector<8x128xf32>
    %cst_18 = arith.constant dense<0.000000e+00> : vector<8xf32>
    %45 = vector.multi_reduction <add>, %44, %cst_18 [1] : vector<8x128xf32> to vector<8xf32>
    %46 = vector.shape_cast %45 : vector<8xf32> to vector<8x1xf32>
    %cst_19 = arith.constant 1.280000e+02 : f32
    %47 = vector.broadcast %cst_19 : f32 to vector<8x1xf32>
    %48 = arith.divf %46, %47 : vector<8x1xf32>
    %49 = arith.mulf %43, %43 : vector<8x1xf32>
    %50 = arith.subf %48, %49 : vector<8x1xf32>
    %cst_20 = arith.constant 0.000000e+00 : f32
    %51 = vector.broadcast %cst_20 : f32 to vector<8x1xf32>
    %52 = arith.maximumf %50, %51 : vector<8x1xf32>
    %cst_21 = arith.constant 9.99999996E-13 : f32
    %53 = vector.broadcast %cst_21 : f32 to vector<8x1xf32>
    %54 = arith.addf %52, %53 : vector<8x1xf32>
    %55 = math.rsqrt %54 : vector<8x1xf32>
    %56 = vector.broadcast %43 : vector<8x1xf32> to vector<8x128xf32>
    %57 = arith.subf %39, %56 : vector<8x128xf32>
    %58 = vector.broadcast %55 : vector<8x1xf32> to vector<8x128xf32>
    %59 = arith.mulf %57, %58 : vector<8x128xf32>
    %c0_22 = arith.constant 0 : index
    %c0_23 = arith.constant 0 : index
    %60 = vector.load %arg4[%c0_22, %c0_23] : memref<1x128xf32, #tpu.memory_space<vmem>>, vector<1x128xf32>
    %61 = vector.broadcast %60 : vector<1x128xf32> to vector<8x128xf32>
    %62 = arith.mulf %59, %61 : vector<8x128xf32>
    %c0_24 = arith.constant 0 : index
    %c0_25 = arith.constant 0 : index
    %63 = vector.load %arg5[%c0_24, %c0_25] : memref<1x128xf32, #tpu.memory_space<vmem>>, vector<1x128xf32>
    %64 = vector.broadcast %63 : vector<1x128xf32> to vector<8x128xf32>
    %65 = arith.addf %62, %64 : vector<8x128xf32>
    %c0_26 = arith.constant 0 : index
    %c0_27 = arith.constant 0 : index
    %66 = vector.load %arg6[%c0_26, %c0_27] : memref<8x128xf32, #tpu.memory_space<vmem>>, vector<8x128xf32>
    tpu.vector_store %arg6[%c0_26, %c0_27], %65 {strides = array<i32>} : memref<8x128xf32, #tpu.memory_space<vmem>>, vector<8x128xf32>,
    return
  }
  func.func @transform_0(%arg0: i32) -> (i32, i32) {
    %c0_i32 = arith.constant 0 : i32
    %c0_i32_0 = arith.constant 0 : i32
    return %arg0, %c0_i32 : i32, i32
  }
  func.func @transform_1(%arg0: i32) -> (i32, i32) {
    %c0_i32 = arith.constant 0 : i32
    %c0_i32_0 = arith.constant 0 : i32
    %c0_i32_1 = arith.constant 0 : i32
    return %c0_i32, %c0_i32_0 : i32, i32
  }
  func.func @transform_2(%arg0: i32) -> (i32, i32) {
    %c0_i32 = arith.constant 0 : i32
    %c0_i32_0 = arith.constant 0 : i32
    %c0_i32_1 = arith.constant 0 : i32
    return %c0_i32, %c0_i32_0 : i32, i32
  }
  func.func @transform_3(%arg0: i32) -> (i32, i32) {
    %c0_i32 = arith.constant 0 : i32
    %c0_i32_0 = arith.constant 0 : i32
    %c0_i32_1 = arith.constant 0 : i32
    return %c0_i32, %c0_i32_0 : i32, i32
  }
  func.func @transform_4(%arg0: i32) -> (i32, i32) {
    %c0_i32 = arith.constant 0 : i32
    %c0_i32_0 = arith.constant 0 : i32
    %c0_i32_1 = arith.constant 0 : i32
    return %c0_i32, %c0_i32_0 : i32, i32
  }
  func.func @transform_5(%arg0: i32) -> (i32, i32) {
    %c0_i32 = arith.constant 0 : i32
    %c0_i32_0 = arith.constant 0 : i32
    return %arg0, %c0_i32 : i32, i32
  }
}

</mosaic_0001>

<llo_original>
// kernel: tpu_custom_call.1
$region0: #{tpu_custom_call.1}
  #allocation0 [shape = 'u32[]', space=smem, size = 0x4, offset = 0x4, fixed_abs, tag = 'smem constant byte address 0x4 - core index']
  #allocation1 [shape = 'u32[72,128]{1,0:T(1,128)}', space=vmem, size = 0x9000, scoped, tag = 'internal scratch']
  %s0 = inlined_call_operand.hbm [shape: f32[16,128], index: 0, kind: input, shape index: {}]
  %s1 = inlined_call_operand.hbm [shape: bf16[128,128], index: 1, kind: input, shape index: {}]
  %s2 = inlined_call_operand.vmem [shape: f32[1,128], index: 2, kind: input, shape index: {}]
  %s3 = inlined_call_operand.vmem [shape: f32[1,128], index: 3, kind: input, shape index: {}]
  %s4 = inlined_call_operand.vmem [shape: f32[1,128], index: 4, kind: input, shape index: {}]
  %s5 = inlined_call_operand.hbm [shape: f32[16,128], index: 5, kind: output, shape index: {}]
  %s6 = sld [smem:[#allocation0]]
  $region61: #{tpu_custom_call.1} parent=0
    _
  %s8 = ssub.s32 1, %s6
  %s9 = scalar_select 0, %s8, %s6
  $region1: #{tpu_custom_call.1} parent=0
    #allocation2 [shape = 'u8[8192]{0}', space=vmem, size = 0x2000, scoped, tag = 'input window, operand 0']
    #allocation3 [shape = 's32[2]{0}', space=sflag, size = 0x8, scoped, tag = 'scoped memory for tpu_custom_call.1']
    #allocation4 [shape = 's32[2]{0}', space=sflag, size = 0x8, scoped, tag = 'scoped memory for tpu_custom_call.1']
    #allocation5 [shape = 'u8[32768]{0}', space=vmem, size = 0x8000, scoped, tag = 'input window, operand 1, single buffered']
    #allocation6 [shape = 's32[1]{0}', space=sflag, size = 0x4, scoped, tag = 'scoped memory for tpu_custom_call.1']
    #allocation7 [shape = 'u8[8192]{0}', space=vmem, size = 0x2000, scoped, tag = 'output window, operand 0']
    %10 = vsyncpa [#allocation3], 0
    %s11 = scalar_lea.sflag [#allocation3], 1
    %12 = vsyncpa %s11, 0
    %13 = vsyncpa [#allocation6], 0
    %14 = vsyncpa [#allocation4], 0
    %s15 = scalar_lea.sflag [#allocation4], 1
    %16 = vsyncpa %s15, 0
    loop: start=0, step=1, limit=4
    $region2: #{tpu_custom_call.1} parent=1 // loop_pre_header
      _
    $region3: #{tpu_custom_call.1} parent=1 // loop_header
      %s18 = sphi 0, %s22
      %p19 = scmp.ge.s32.totalorder %s18, 4
      %s28 = sphi 0, %s30
      %s31 = sphi 0, %s28
      %s32 = sphi 0, %s31
      %s48 = sphi 0, %s32
      %s52 = sphi 0, %s52
      %s54 = sphi 0, %s52
      %s55 = sphi 0, %s54
      %s69 = sphi 0, %s55
      %s73 = sphi 0, %s73
      %s75 = sphi 0, %s73
      %s76 = sphi 0, %s75
      %s90 = sphi 0, %s76
      %s94 = sphi 0, %s94
      %s96 = sphi 0, %s94
      %s97 = sphi 0, %s96
      %s111 = sphi 0, %s97
      %s115 = sphi 0, %s115
      %s117 = sphi 0, %s115
      %s118 = sphi 0, %s117
      %s132 = sphi 0, %s118
      %s138 = sphi 0, %s140
      %s141 = sphi 0, %s138
      %s142 = sphi 0, %s141
      %s158 = sphi 0, %s142
    $region4: #{tpu_custom_call.1} parent=1 // loop_header_branch
      %21 = sbr.rel (%p19) target = $region8
    $region5: #{tpu_custom_call.1} parent=1 // loop_body
      %s23 = ssub.s32 %s18, 1
      %s24 = ssub.s32 %s18, 2
      %s25 = sadd.s32 %s18, 1
      %s26 = ssub.s32 %s18, %s25
      %p27 = scmp.eq.s32.totalorder %s26, 0
      %s29 = sadd.s32 %s28, 1
      %s30 = scalar_select %p27, %s28, %s29
      %p33 = pneg %p27
      %p34 = scmp.eq.s32.totalorder %s18, 1
      %p35 = por %p33, %p34
      %p36 = scmp.ne.s32.totalorder %s28, %s31
      %p37 = scmp.eq.s32.totalorder %s18, 0
      %p38 = por %p36, %p37
      %p39 = scmp.ne.s32.totalorder %s28, %s31
      %p40 = scmp.eq.s32.totalorder %s23, 1
      %p41 = por %p39, %p40
      %p42 = scmp.ne.s32.totalorder %s31, %s32
      %p43 = scmp.eq.s32.totalorder %s23, 0
      %p44 = por %p42, %p43
      %p45 = scmp.ne.s32.totalorder %s31, %s32
      %p46 = scmp.eq.s32.totalorder %s24, 1
      %p47 = por %p45, %p46
      %p49 = scmp.ne.s32.totalorder %s32, %s48
      %p50 = scmp.eq.s32.totalorder %s24, 0
      %p51 = por %p49, %p50
      %s53 = sadd.s32 %s52, 1
      %p56 = scmp.eq.s32.totalorder %s18, 1
      %p57 = scmp.ne.s32.totalorder %s52, %s54
      %p58 = scmp.eq.s32.totalorder %s18, 0
      %p59 = por %p57, %p58
      %p60 = scmp.ne.s32.totalorder %s52, %s54
      %p61 = scmp.eq.s32.totalorder %s23, 1
      %p62 = por %p60, %p61
      %p63 = scmp.ne.s32.totalorder %s54, %s55
      %p64 = scmp.eq.s32.totalorder %s23, 0
      %p65 = por %p63, %p64
      %p66 = scmp.ne.s32.totalorder %s54, %s55
      %p67 = scmp.eq.s32.totalorder %s24, 1
      %p68 = por %p66, %p67
      %p70 = scmp.ne.s32.totalorder %s55, %s69
      %p71 = scmp.eq.s32.totalorder %s24, 0
      %p72 = por %p70, %p71
      %s74 = sadd.s32 %s73, 1
      %p77 = scmp.eq.s32.totalorder %s18, 1
      %p78 = scmp.ne.s32.totalorder %s73, %s75
      %p79 = scmp.eq.s32.totalorder %s18, 0
      %p80 = por %p78, %p79
      %p81 = scmp.ne.s32.totalorder %s73, %s75
      %p82 = scmp.eq.s32.totalorder %s23, 1
      %p83 = por %p81, %p82
      %p84 = scmp.ne.s32.totalorder %s75, %s76
      %p85 = scmp.eq.s32.totalorder %s23, 0
      %p86 = por %p84, %p85
      %p87 = scmp.ne.s32.totalorder %s75, %s76
      %p88 = scmp.eq.s32.totalorder %s24, 1
      %p89 = por %p87, %p88
      %p91 = scmp.ne.s32.totalorder %s76, %s90
      %p92 = scmp.eq.s32.totalorder %s24, 0
      %p93 = por %p91, %p92
      %s95 = sadd.s32 %s94, 1
      %p98 = scmp.eq.s32.totalorder %s18, 1
      %p99 = scmp.ne.s32.totalorder %s94, %s96
      %p100 = scmp.eq.s32.totalorder %s18, 0
      %p101 = por %p99, %p100
      %p102 = scmp.ne.s32.totalorder %s94, %s96
      %p103 = scmp.eq.s32.totalorder %s23, 1
      %p104 = por %p102, %p103
      %p105 = scmp.ne.s32.totalorder %s96, %s97
      %p106 = scmp.eq.s32.totalorder %s23, 0
      %p107 = por %p105, %p106
      %p108 = scmp.ne.s32.totalorder %s96, %s97
      %p109 = scmp.eq.s32.totalorder %s24, 1
      %p110 = por %p108, %p109
      %p112 = scmp.ne.s32.totalorder %s97, %s111
      %p113 = scmp.eq.s32.totalorder %s24, 0
      %p114 = por %p112, %p113
      %s116 = sadd.s32 %s115, 1
      %p119 = scmp.eq.s32.totalorder %s18, 1
      %p120 = scmp.ne.s32.totalorder %s115, %s117
      %p121 = scmp.eq.s32.totalorder %s18, 0
      %p122 = por %p120, %p121
      %p123 = scmp.ne.s32.totalorder %s115, %s117
      %p124 = scmp.eq.s32.totalorder %s23, 1
      %p125 = por %p123, %p124
      %p126 = scmp.ne.s32.totalorder %s117, %s118
      %p127 = scmp.eq.s32.totalorder %s23, 0
      %p128 = por %p126, %p127
      %p129 = scmp.ne.s32.totalorder %s117, %s118
      %p130 = scmp.eq.s32.totalorder %s24, 1
      %p131 = por %p129, %p130
      %p133 = scmp.ne.s32.totalorder %s118, %s132
      %p134 = scmp.eq.s32.totalorder %s24, 0
      %p135 = por %p133, %p134
      %s136 = ssub.s32 %s18, %s25
      %p137 = scmp.eq.s32.totalorder %s136, 0
      %s139 = sadd.s32 %s138, 1
      %s140 = scalar_select %p137, %s138, %s139
      %p143 = pneg %p137
      %p144 = scmp.eq.s32.totalorder %s18, 1
      %p145 = por %p143, %p144
      %p146 = scmp.ne.s32.totalorder %s138, %s141
      %p147 = scmp.eq.s32.totalorder %s18, 0
      %p148 = por %p146, %p147
      %p149 = scmp.ne.s32.totalorder %s138, %s141
      %p150 = scmp.eq.s32.totalorder %s23, 1
      %p151 = por %p149, %p150
      %p152 = scmp.ne.s32.totalorder %s141, %s142
      %p153 = scmp.eq.s32.totalorder %s23, 0
      %p154 = por %p152, %p153
      %p155 = scmp.ne.s32.totalorder %s141, %s142
      %p156 = scmp.eq.s32.totalorder %s24, 1
      %p157 = por %p155, %p156
      %p159 = scmp.ne.s32.totalorder %s142, %s158
      %p160 = scmp.eq.s32.totalorder %s24, 0
      %p161 = por %p159, %p160
      %p162 = scmp.le.s32.totalorder 1, %s18
      %p163 = scmp.lt.s32.totalorder %s18, 3
      %p164 = pnand %p162, %p163
      %p165 = pneg %p164
      // Predicated region
      $region9: #{tpu_custom_call.1} parent=5 // pred_check
        _
      $region10: #{tpu_custom_call.1} parent=5 // pred_check_branch
        %167 = sbr.rel (%p164) target = $region12
      $region11: #{tpu_custom_call.1} parent=5 // pred_region
        %s168 = ssub.s32 %s18, 1
        // Predicated region
        $region13: #{tpu_custom_call.1} parent=11 // pred_check
          %p169 = pneg %p65
        $region14: #{tpu_custom_call.1} parent=11 // pred_check_branch
          %171 = sbr.rel (%p169) target = $region16
        $region15: #{tpu_custom_call.1} parent=11 // pred_region
          %173 = vsyncadd [#allocation6], 0
          %s174 = sshll.u32 %s1, 4
          %s175 = int_to_ptr.hbm [resolvable:$true] %s174
          %s176 = sshll.u32 [#allocation5], 4
          %s177 = int_to_ptr.vmem [resolvable:$true] %s176
          %182 = dma.hbm_to_vmem [thread:$0]  %s175, 1024, %s177, [#allocation6], 64, 64, 4
        $region16: #{tpu_custom_call.1} parent=11 // pred_fallthru
          _
        // Predicated region
        $region17: #{tpu_custom_call.1} parent=11 // pred_check
          %p183 = pneg %p86
        $region18: #{tpu_custom_call.1} parent=11 // pred_check_branch
          %185 = sbr.rel (%p183) target = $region20
        $region19: #{tpu_custom_call.1} parent=11 // pred_region
          _
        $region20: #{tpu_custom_call.1} parent=11 // pred_fallthru
          _
        // Predicated region
        $region21: #{tpu_custom_call.1} parent=11 // pred_check
          %p186 = pneg %p107
        $region22: #{tpu_custom_call.1} parent=11 // pred_check_branch
          %188 = sbr.rel (%p186) target = $region24
        $region23: #{tpu_custom_call.1} parent=11 // pred_region
          _
        $region24: #{tpu_custom_call.1} parent=11 // pred_fallthru
          _
        // Predicated region
        $region25: #{tpu_custom_call.1} parent=11 // pred_check
          %p189 = pneg %p128
        $region26: #{tpu_custom_call.1} parent=11 // pred_check_branch
          %191 = sbr.rel (%p189) target = $region28
        $region27: #{tpu_custom_call.1} parent=11 // pred_region
          _
        $region28: #{tpu_custom_call.1} parent=11 // pred_fallthru
          _
      $region12: #{tpu_custom_call.1} parent=5 // pred_fallthru
        _
      %p192 = scmp.lt.s32.totalorder %s18, 2
      // Predicated region
      $region29: #{tpu_custom_call.1} parent=5 // pred_check
        %p193 = pneg %p192
      $region30: #{tpu_custom_call.1} parent=5 // pred_check_branch
        %195 = sbr.rel (%p193) target = $region32
      $region31: #{tpu_custom_call.1} parent=5 // pred_region
        // Predicated region
        $region33: #{tpu_custom_call.1} parent=31 // pred_check
          %p196 = pneg %p38
        $region34: #{tpu_custom_call.1} parent=31 // pred_check_branch
          %198 = sbr.rel (%p196) target = $region36
        $region35: #{tpu_custom_call.1} parent=31 // pred_region
          %s199 = sand.u32 %s28, 1
          %s200 = scalar_lea.sflag [#allocation3], %s199
          %s201 = sand.u32 %s28, 1
          %s202 = smul.addr %s201, 8
          %s203 = scalar_lea.vmem [#allocation2], %s202
          %205 = vsyncadd %s200, 0
          %s206 = smul.addr %s18, 8
          %s207 = scalar_lea.hbm %s0, %s206
          %s209 = sshll.u32 %s207, 4
          %s210 = int_to_ptr.hbm [resolvable:$true] %s209
          %s211 = sshll.u32 %s203, 4
          %s212 = int_to_ptr.vmem [resolvable:$true] %s211
          %214 = dma.hbm_to_vmem [thread:$0]  %s210, 128, %s212, %s200
        $region36: #{tpu_custom_call.1} parent=31 // pred_fallthru
          _
      $region32: #{tpu_custom_call.1} parent=5 // pred_fallthru
        _
      %p215 = scmp.le.s32.totalorder 1, %s18
      %p216 = scmp.lt.s32.totalorder %s18, 3
      %p217 = pnand %p215, %p216
      %p218 = pneg %p217
      // Predicated region
      $region37: #{tpu_custom_call.1} parent=5 // pred_check
        _
      $region38: #{tpu_custom_call.1} parent=5 // pred_check_branch
        %220 = sbr.rel (%p217) target = $region40
      $region39: #{tpu_custom_call.1} parent=5 // pred_region
        %s221 = ssub.s32 %s18, 1
        %s222 = sand.u32 %s31, 1
        %s223 = scalar_lea.sflag [#allocation3], %s222
        %s224 = sand.u32 %s31, 1
        %s225 = smul.addr %s224, 8
        %s226 = scalar_lea.vmem [#allocation2], %s225
        // Predicated region
        $region41: #{tpu_custom_call.1} parent=39 // pred_check
          %p227 = pneg %p44
        $region42: #{tpu_custom_call.1} parent=39 // pred_check_branch
          %229 = sbr.rel (%p227) target = $region44
        $region43: #{tpu_custom_call.1} parent=39 // pred_region
          %231 = dma.done %s223, 128
        $region44: #{tpu_custom_call.1} parent=39 // pred_fallthru
          _
        // Predicated region
        $region45: #{tpu_custom_call.1} parent=39 // pred_check
          %p232 = pneg %p65
        $region46: #{tpu_custom_call.1} parent=39 // pred_check_branch
          %234 = sbr.rel (%p232) target = $region48
        $region47: #{tpu_custom_call.1} parent=39 // pred_region
          %236 = dma.done [#allocation6], 1024
        $region48: #{tpu_custom_call.1} parent=39 // pred_fallthru
          _
        %s237 = sand.u32 %s31, 1
        %s238 = scalar_lea.sflag [#allocation3], %s237
        %s239 = sand.u32 %s31, 1
        %s240 = smul.addr %s239, 8
        %s241 = scalar_lea.vmem [#allocation2], %s240
        %p242 = pneg %p44
        %p243 = pneg %p41
        %p244 = pneg %p65
        %p245 = pneg %p62
        %p246 = pneg %p86
        %p247 = pneg %p83
        %p248 = pneg %p107
        %p249 = pneg %p104
        %p250 = pneg %p128
        %p251 = pneg %p125
        %p252 = pneg %p154
        %p253 = pneg %p151
        %s254 = sand.u32 %s141, 1
        %s255 = scalar_lea.sflag [#allocation4], %s254
        %s256 = sand.u32 %s141, 1
        %s257 = smul.addr %s256, 8
        %s258 = scalar_lea.vmem [#allocation7], %s257
        %v259 = vld [vmem:[%s226] sm:$0xff]
        %v260 = vpack.c.bf16 %v259, %v259
        %v261 = vld [vmem:[#allocation5] sm:$0xf]
        %v262 = vld [vmem:[#allocation5 + $0x4] sm:$0xf]
        %v263 = vld [vmem:[#allocation5 + $0x8] sm:$0xf]
        %v264 = vld [vmem:[#allocation5 + $0xc] sm:$0xf]
        %v265 = vld [vmem:[#allocation5 + $0x10] sm:$0xf]
        %v266 = vld [vmem:[#allocation5 + $0x14] sm:$0xf]
        %v267 = vld [vmem:[#allocation5 + $0x18] sm:$0xf]
        %v268 = vld [vmem:[#allocation5 + $0x1c] sm:$0xf]
        %v269 = vld [vmem:[#allocation5 + $0x20] sm:$0xf]
        %v270 = vld [vmem:[#allocation5 + $0x24] sm:$0xf]
        %v271 = vld [vmem:[#allocation5 + $0x28] sm:$0xf]
        %v272 = vld [vmem:[#allocation5 + $0x2c] sm:$0xf]
        %v273 = vld [vmem:[#allocation5 + $0x30] sm:$0xf]
        %v274 = vld [vmem:[#allocation5 + $0x34] sm:$0xf]
        %v275 = vld [vmem:[#allocation5 + $0x38] sm:$0xf]
        %v276 = vld [vmem:[#allocation5 + $0x3c] sm:$0xf]
        %v277 = vld [vmem:[%s2] sm:$0x1]
        %v279 = vperm.slane %v277, 0
        %v297 = vunpack.c.l.b16 %v261
        %v298 = vunpack.c.l.b16 %v262
        %v299 = vunpack.c.l.b16 %v263
        %v300 = vunpack.c.l.b16 %v264
        %v301 = vunpack.c.l.b16 %v265
        %v302 = vunpack.c.l.b16 %v266
        %v303 = vunpack.c.l.b16 %v267
        %v304 = vunpack.c.l.b16 %v268
        %v305 = vunpack.c.l.b16 %v269
        %v306 = vunpack.c.l.b16 %v270
        %v307 = vunpack.c.l.b16 %v271
        %v308 = vunpack.c.l.b16 %v272
        %v309 = vunpack.c.l.b16 %v273
        %v310 = vunpack.c.l.b16 %v274
        %v311 = vunpack.c.l.b16 %v275
        %v312 = vunpack.c.l.b16 %v276
        %v313 = vpack.c.b16 %v298, %v297
        %v314 = vpack.c.b16 %v300, %v299
        %v315 = vpack.c.b16 %v302, %v301
        %v316 = vpack.c.b16 %v304, %v303
        %v317 = vpack.c.b16 %v306, %v305
        %v318 = vpack.c.b16 %v308, %v307
        %v319 = vpack.c.b16 %v310, %v309
        %v320 = vpack.c.b16 %v312, %v311
        %329 = vmatpush.bf16.msra.mxu0 %v320
        %330 = vmatpush.bf16.msra.mxu0 %v319
        %331 = vmatpush.bf16.msra.mxu0 %v318
        %332 = vmatpush.bf16.msra.mxu0 %v317
        %333 = vmatpush.bf16.msra.mxu0 %v316
        %334 = vmatpush.bf16.msra.mxu0 %v315
        %335 = vmatpush.bf16.msra.mxu0 %v314
        %336 = vmatpush.bf16.msra.mxu0 %v313
        %337 = vmatmul.bf16.gmra.mxu0 %v260
        %v338 = vpop.f32.mrf.mxu0
        %v339 = vadd.f32 %v279, %v338
        %v340 = vpop.f32.mrf.mxu0
        %341 = vdwg.mxu0
        %v342 = vand.u32 2147483647, %v339
        %v343 = vmul.f32 %v342, 0.70710677
        %v344 = vmul.f32 %v343, 0.3275911
        %v345 = vadd.f32 %v344, 1.0
        %v346 = vrcp.pop %v345
        %v347 = vmul.f32 %v346, 0.5307027
        %v348 = vadd.f32 %v347, -0.72657603
        %v349 = vmul.f32 %v348, %v346
        %v350 = vadd.f32 %v349, 0.7107069
        %v351 = vmul.f32 %v350, %v346
        %v352 = vadd.f32 %v351, -0.14224836
        %v353 = vmul.f32 %v352, %v346
        %v354 = vadd.f32 %v353, 0.1274148
        %v355 = vmul.f32 %v354, %v346
        %v356 = vmul.f32 %v339, %v339
        %v357 = vmul.f32 %v356, -0.5
        %v358 = vmul.f32 %v357, 1.442695
        %v359 = vpow.pop %v358
        %v360 = vmul.f32 %v355, %v359
        %vm361 = vcmp.ge.f32.partialorder %v339, 0.0
        %v362 = vsub.f32 1.0, %v360
        %v363 = vsel %vm361, %v362, %v360
        %v364 = vmul.f32 %v339, %v363
        %365 = vadd.xlane.f32.xlu0 %v364
        %v366 = vpop.xlane.xlu0 %365
        %v367 = vrcp.pop 128.0
        %v368 = vmul.f32 128.0, %v367
        %v369 = vsub.f32 1.0, %v368
        %v370 = vmul.f32 %v367, %v369
        %v371 = vadd.f32 %v367, %v370
        %vm372 = vweird.f32 %v367
        %v373 = vsel %vm372, %v367, %v371
        %v374 = vmul.f32 %v366, %v373
        %v375 = vmul.f32 %v364, %v364
        %376 = vadd.xlane.f32.xlu0 %v375
        %v377 = vpop.xlane.xlu0 %376
        %v378 = vmul.f32 %v377, %v373
        %v379 = vmul.f32 %v374, %v374
        %v380 = vsub.f32 %v378, %v379
        %v381 = vmax.f32 %v380, 0.0
        %v382 = vadd.f32 %v381, 1e-12
        %v383 = vrsqrt.pop %v382
        %v384 = vmul.f32 %v383, %v382
        %v385 = vmul.f32 %v384, %v383
        %v386 = vmul.f32 0.5, %v385
        %v387 = vsub.f32 1.5, %v386
        %v388 = vmul.f32 %v383, %v387
        %vm389 = vweird.f32 %v382
        %vm390 = vweird.f32 %v383
        %vm391 = vmor %vm389, %vm390
        %v392 = vsel %vm391, %v383, %v388
        %v393 = vsub.f32 %v364, %v374
        %v394 = vmul.f32 %v393, %v392
        %v395 = vld [vmem:[%s3] sm:$0x1]
        %v397 = vperm.slane %v395, 0
        %v399 = vmul.f32 %v394, %v397
        %v400 = vld [vmem:[%s4] sm:$0x1]
        %v402 = vperm.slane %v400, 0
        %v404 = vadd.f32 %v399, %v402
        %405 = vst [vmem:[%s258] sm:$0xff] %v404
        %s406 = sand.u32 %s141, 1
        %s407 = scalar_lea.sflag [#allocation4], %s406
        %s408 = sand.u32 %s141, 1
        %s409 = smul.addr %s408, 8
        %s410 = scalar_lea.vmem [#allocation7], %s409
        // Predicated region
        $region49: #{tpu_custom_call.1} parent=39 // pred_check
          %p411 = pneg %p151
        $region50: #{tpu_custom_call.1} parent=39 // pred_check_branch
          %413 = sbr.rel (%p411) target = $region52
        $region51: #{tpu_custom_call.1} parent=39 // pred_region
          %415 = vsyncadd %s407, 0
          %s416 = smul.addr %s23, 8
          %s417 = scalar_lea.hbm %s5, %s416
          %s419 = sshll.u32 %s410, 4
          %s420 = int_to_ptr.vmem [resolvable:$true] %s419
          %s421 = sshll.u32 %s417, 4
          %s422 = int_to_ptr.hbm [resolvable:$true] %s421
          %424 = dma.vmem_to_hbm [thread:$0]  %s420, 128, %s422, %s407
        $region52: #{tpu_custom_call.1} parent=39 // pred_fallthru
          _
      $region40: #{tpu_custom_call.1} parent=5 // pred_fallthru
        _
      %p425 = scmp.le.s32.totalorder 2, %s18
      // Predicated region
      $region53: #{tpu_custom_call.1} parent=5 // pred_check
        %p426 = pneg %p425
      $region54: #{tpu_custom_call.1} parent=5 // pred_check_branch
        %428 = sbr.rel (%p426) target = $region56
      $region55: #{tpu_custom_call.1} parent=5 // pred_region
        %s429 = ssub.s32 %s18, 2
        // Predicated region
        $region57: #{tpu_custom_call.1} parent=55 // pred_check
          %p430 = pneg %p157
        $region58: #{tpu_custom_call.1} parent=55 // pred_check_branch
          %432 = sbr.rel (%p430) target = $region60
        $region59: #{tpu_custom_call.1} parent=55 // pred_region
          %s433 = sand.u32 %s142, 1
          %s434 = scalar_lea.sflag [#allocation4], %s433
          %s435 = sand.u32 %s142, 1
          %s436 = smul.addr %s435, 8
          %s437 = scalar_lea.vmem [#allocation7], %s436
          %439 = dma.done %s434, 128
        $region60: #{tpu_custom_call.1} parent=55 // pred_fallthru
          _
      $region56: #{tpu_custom_call.1} parent=5 // pred_fallthru
        _
    $region6: #{tpu_custom_call.1} parent=1 // loop_footer
      %s22 = sadd.s32 1, %s18
    $region7: #{tpu_custom_call.1} parent=1 // loop_footer_branch
      %17 = sbr.rel target = $region3
    $region8: #{tpu_custom_call.1} parent=1 // loop_exit
      _
    %440 = vsyncpa [#allocation3], 1
    %s441 = scalar_lea.sflag [#allocation3], 1
    %442 = vsyncpa %s441, 1
    %443 = vsyncpa [#allocation6], 1
    %444 = vsyncpa [#allocation4], 1
    %s445 = scalar_lea.sflag [#allocation4], 1
    %446 = vsyncpa %s445, 1

</llo_original>
